<compile_context>
chip_gen: v7x
topology: tpu7x:2x2x1
jax: 0.10.0
libtpu: 0.0.40
codegen_flags: <defaults>
</compile_context>

<pallas_src>
import functools

import jax
import jax.numpy as jnp
from jax.experimental import pallas as pl
from jax.experimental.pallas import tpu as pltpu


def _round_up(n, m):
    return ((n + m - 1) // m) * m


def _rnn_chunk_kernel(x_ref, w_ih_ref, w_hh_ref, b_ref, h0_ref, o_ref,
                      h_scratch, pre_scratch, *, t_chunk, b_pad):
    """One time-chunk of the recurrence; grid axis 0 walks chunks in order.

    x_ref    : (t_chunk*b_pad, i_pad)  chunk of inputs, rows = (t, b) flattened
    w_ih_ref : (i_pad, h_pad)          W_ih^T, grid-invariant (VMEM resident)
    w_hh_ref : (h_pad, h_pad)          W_hh^T, grid-invariant (VMEM resident)
    b_ref    : (1, h_pad)              b_ih + b_hh (f32), grid-invariant
    h0_ref   : (b_pad, h_pad)          initial hidden (f32), grid-invariant
    o_ref    : (t_chunk*b_pad, h_pad)  chunk of hidden-state outputs
    h_scratch   : VMEM (b_pad, h_pad) f32          carried hidden state
    pre_scratch : VMEM (t_chunk*b_pad, h_pad) f32  hoisted input projection
    """
    @pl.when(pl.program_id(0) == 0)
    def _():
        h_scratch[...] = h0_ref[...].astype(jnp.float32)

    cdt = w_hh_ref.dtype  # matmul compute dtype = weight dtype (bf16 OK)

    # (1) Bulk input projection for the whole chunk: one large MXU GEMM
    #     (M = t_chunk*b_pad rows), bias folded in, off the serial chain.
    pre_scratch[...] = (
        jnp.dot(x_ref[...], w_ih_ref[...], preferred_element_type=jnp.float32)
        + b_ref[...])

    # (2) Serial recurrence: only the small (b_pad,h_pad)x(h_pad,h_pad) GEMM
    #     plus tanh stay on the dependency chain.  Unrolled for LLO visibility.
    def step(t, carry):
        row = pl.multiple_of(t * b_pad, b_pad)
        h = h_scratch[...]
        pre_t = pre_scratch[pl.ds(row, b_pad), :] + jnp.dot(
            h.astype(cdt), w_hh_ref[...], preferred_element_type=jnp.float32)
        h_new = jnp.tanh(pre_t)                       # f32 epilogue (VPU/EUP)
        h_scratch[...] = h_new
        o_ref[pl.ds(row, b_pad), :] = h_new.astype(o_ref.dtype)
        return carry

    jax.lax.fori_loop(0, t_chunk, step, 0, unroll=True)


def prepare_params(w_ih, w_hh, b_ih, b_hh, param_dtype=None):
    """One-time prep: transpose, pre-sum bias, zero-pad, optional bf16 cast."""
    H, I = w_ih.shape
    assert w_hh.shape == (H, H)
    if param_dtype is None:
        param_dtype = w_ih.dtype
    i_pad = _round_up(I, 8)      # sublane granularity only (NOT 128)
    h_pad = _round_up(H, 128)    # lane-dense output dim

    w_iht = jnp.zeros((i_pad, h_pad), param_dtype)
    w_iht = w_iht.at[:I, :H].set(w_ih.T.astype(param_dtype))
    w_hht = jnp.zeros((h_pad, h_pad), param_dtype)
    w_hht = w_hht.at[:H, :H].set(w_hh.T.astype(param_dtype))
    bias = jnp.zeros((1, h_pad), jnp.float32)
    bias = bias.at[0, :H].set((b_ih + b_hh).astype(jnp.float32))
    return w_iht, w_hht, bias


@functools.partial(jax.jit, static_argnames=("t_chunk",))
def rnn_seq_forward(x_seq, h0, w_iht, w_hht, bias, *, t_chunk=32):
    """Run T RNNCell steps inside ONE pallas_call.

    x_seq: (T, B, I), h0: (B, H).  Returns all hidden states (T, B, H) f32.
    """
    T, B, I = x_seq.shape
    H = h0.shape[-1]
    i_pad, h_pad = w_iht.shape
    assert w_hht.shape == (h_pad, h_pad)
    cdt = w_iht.dtype

    b_pad = _round_up(max(B, 8), 8)
    t_c = max(1, min(t_chunk, T))          # chunk length (static)
    t_pad = _round_up(T, t_c)
    n_chunks = t_pad // t_c
    rows = t_c * b_pad

    # Pad (time -> multiple of t_c, batch -> 8, features -> 8) and flatten
    # (t, b) into rows so the kernel works on plain 2-D, lane-dense slabs.
    # x is stored in the compute dtype (bf16 on the fast path -> half the DMA).
    x_p = jnp.zeros((t_pad, b_pad, i_pad), cdt)
    x_p = x_p.at[:T, :B, :I].set(x_seq.astype(cdt))
    x_flat = x_p.reshape(t_pad * b_pad, i_pad)
    h0_p = jnp.zeros((b_pad, h_pad), jnp.float32).at[:B, :H].set(
        h0.astype(jnp.float32))

    kernel = functools.partial(_rnn_chunk_kernel, t_chunk=t_c, b_pad=b_pad)

    out = pl.pallas_call(
        kernel,
        out_shape=jax.ShapeDtypeStruct((t_pad * b_pad, h_pad), jnp.float32),
        grid=(n_chunks,),
        in_specs=[
            pl.BlockSpec((rows, i_pad), lambda c: (c, 0)),      # x chunk
            pl.BlockSpec((i_pad, h_pad), lambda c: (0, 0)),     # W_ih^T
            pl.BlockSpec((h_pad, h_pad), lambda c: (0, 0)),     # W_hh^T
            pl.BlockSpec((1, h_pad), lambda c: (0, 0)),         # bias
            pl.BlockSpec((b_pad, h_pad), lambda c: (0, 0)),     # h0
        ],
        out_specs=pl.BlockSpec((rows, h_pad), lambda c: (c, 0)),
        scratch_shapes=[
            pltpu.VMEM((b_pad, h_pad), jnp.float32),            # carried h
            pltpu.VMEM((rows, h_pad), jnp.float32),             # pre_x chunk
        ],
        compiler_params=pltpu.CompilerParams(
            dimension_semantics=("arbitrary",),   # time chunks are sequential
        ),
    )(x_flat, w_iht, w_hht, bias, h0_p)

    return out.reshape(t_pad, b_pad, h_pad)[:T, :B, :H]


def rnn_cell_forward(x, h, w_iht, w_hht, bias):
    """Single nn.RNNCell step (the module's forward): (B,I),(B,H) -> (B,H)."""
    return rnn_seq_forward(x[None], h, w_iht, w_hht, bias)[0]


# ---------------- reference (pure JAX, mirrors PyTorch nn.RNNCell) ----------
def reference_cell(x, h, w_ih, w_hh, b_ih, b_hh):
    return jnp.tanh(x @ w_ih.T + b_ih + h @ w_hh.T + b_hh)


def reference_seq(x_seq, h0, w_ih, w_hh, b_ih, b_hh):
    def step(h, x):
        h = reference_cell(x, h, w_ih, w_hh, b_ih, b_hh)
        return h, h
    _, hs = jax.lax.scan(step, h0, x_seq)
    return hs


if __name__ == "__main__":
    # Module constants: batch_size=1, input_size=4, hidden_size=4.
    batch_size = 1
    input_size = 4
    hidden_size = 4
    seq_len = 8  # extra sequence check exercising the in-kernel recurrence

    key = jax.random.PRNGKey(0)
    k_x, k_xs, k_wih, k_whh, k_bih, k_bhh = jax.random.split(key, 6)

    # PyTorch-style U(-1/sqrt(H), 1/sqrt(H)) init.
    bound = 1.0 / jnp.sqrt(jnp.float32(hidden_size))
    w_ih = jax.random.uniform(
        k_wih, (hidden_size, input_size), jnp.float32, -bound, bound)
    w_hh = jax.random.uniform(
        k_whh, (hidden_size, hidden_size), jnp.float32, -bound, bound)
    b_ih = jax.random.uniform(k_bih, (hidden_size,), jnp.float32, -bound, bound)
    b_hh = jax.random.uniform(k_bhh, (hidden_size,), jnp.float32, -bound, bound)

    x = jax.random.normal(k_x, (batch_size, input_size), jnp.float32)
    h0 = jnp.zeros((batch_size, hidden_size), jnp.float32)  # init_hidden()
    x_seq = jax.random.normal(
        k_xs, (seq_len, batch_size, input_size), jnp.float32)

    # ---- exact f32 path (matches PyTorch nn.RNNCell bit-for-bit-ish) ----
    w_iht, w_hht, bias = prepare_params(w_ih, w_hh, b_ih, b_hh)

    h1 = jax.block_until_ready(rnn_cell_forward(x, h0, w_iht, w_hht, bias))
    ref1 = reference_cell(x, h0, w_ih, w_hh, b_ih, b_hh)
    assert h1.shape == (batch_size, hidden_size)
    assert jnp.allclose(h1, ref1, atol=1e-5, rtol=1e-5)

    hs = jax.block_until_ready(rnn_seq_forward(x_seq, h0, w_iht, w_hht, bias))
    refs = reference_seq(x_seq, h0, w_ih, w_hh, b_ih, b_hh)
    assert hs.shape == (seq_len, batch_size, hidden_size)
    assert jnp.allclose(hs, refs, atol=1e-5, rtol=1e-5)

    # ---- bf16 fast path (weights + x bf16, f32 accumulation/epilogue) ----
    # Slight deviation from all-f32 PyTorch math; tolerance-tested as advised.
    w_iht16, w_hht16, bias16 = prepare_params(
        w_ih, w_hh, b_ih, b_hh, param_dtype=jnp.bfloat16)
    hs16 = jax.block_until_ready(
        rnn_seq_forward(x_seq, h0, w_iht16, w_hht16, bias16))
    assert jnp.allclose(hs16, refs, atol=3e-2, rtol=3e-2)

    print("KERNEL_OK")
</pallas_src>

<mosaic_0001>
module attributes {stable_mosaic.version = 11 : i64} {
  func.func @_rnn_chunk_kernel(%arg0: i32, %arg1: memref<8x8xf32, #tpu.memory_space<vmem>>, %arg2: memref<8x128xf32, #tpu.memory_space<vmem>>, %arg3: memref<128x128xf32, #tpu.memory_space<vmem>>, %arg4: memref<1x128xf32, #tpu.memory_space<vmem>>, %arg5: memref<8x128xf32, #tpu.memory_space<vmem>>, %arg6: memref<8x128xf32, #tpu.memory_space<vmem>>, %arg7: memref<8x128xf32, #tpu.memory_space<vmem>>, %arg8: memref<8x128xf32, #tpu.memory_space<vmem>>) attributes {dimension_semantics = [#tpu.dimension_semantics<arbitrary>], iteration_bounds = array<i64: 1>, scalar_prefetch = 0 : i64, scratch_operands = 2 : i64, tpu.core_type = #tpu.core_type<tc>, window_params = [{transform_indices = @transform_0, window_bounds = array<i64: 8, 8>}, {pipeline_mode = #tpu.pipeline_mode<synchronous>, transform_indices = @transform_1, window_bounds = array<i64: 8, 128>}, {pipeline_mode = #tpu.pipeline_mode<synchronous>, transform_indices = @transform_2, window_bounds = array<i64: 128, 128>}, {pipeline_mode = #tpu.pipeline_mode<synchronous>, transform_indices = @transform_3, window_bounds = array<i64: 1, 128>}, {pipeline_mode = #tpu.pipeline_mode<synchronous>, transform_indices = @transform_4, window_bounds = array<i64: 8, 128>}, {transform_indices = @transform_5, window_bounds = array<i64: 8, 128>}]} {
    %c0_i32 = arith.constant 0 : i32
    %0 = arith.cmpi eq, %arg0, %c0_i32 : i32
    %1 = arith.extui %0 : i1 to i32
    %c0_i32_0 = arith.constant 0 : i32
    %2 = arith.cmpi ne, %1, %c0_i32_0 : i32
    scf.if %2 {
      %c0_18 = arith.constant 0 : index
      %c0_19 = arith.constant 0 : index
      %22 = vector.load %arg5[%c0_18, %c0_19] : memref<8x128xf32, #tpu.memory_space<vmem>>, vector<8x128xf32>
      %c0_20 = arith.constant 0 : index
      %c0_21 = arith.constant 0 : index
      %23 = vector.load %arg7[%c0_20, %c0_21] : memref<8x128xf32, #tpu.memory_space<vmem>>, vector<8x128xf32>
      tpu.vector_store %arg7[%c0_20, %c0_21], %22 {strides = array<i32>} : memref<8x128xf32, #tpu.memory_space<vmem>>, vector<8x128xf32>,
    } else {
    }
    %c0 = arith.constant 0 : index
    %c0_1 = arith.constant 0 : index
    %3 = vector.load %arg1[%c0, %c0_1] : memref<8x8xf32, #tpu.memory_space<vmem>>, vector<8x8xf32>
    %c0_2 = arith.constant 0 : index
    %c0_3 = arith.constant 0 : index
    %4 = vector.load %arg2[%c0_2, %c0_3] : memref<8x128xf32, #tpu.memory_space<vmem>>, vector<8x128xf32>
    %cst = arith.constant dense<0.000000e+00> : vector<8x128xf32>
    %5 = tpu.matmul %3, %4, %cst {dimension_numbers = #tpu.dot_dimension_numbers<[1], [0], [0], [1], [0, 0, 1, 1], [], []>} : vector<8x8xf32>, vector<8x128xf32>, vector<8x128xf32> -> vector<8x128xf32>
    %c0_4 = arith.constant 0 : index
    %c0_5 = arith.constant 0 : index
    %6 = vector.load %arg4[%c0_4, %c0_5] : memref<1x128xf32, #tpu.memory_space<vmem>>, vector<1x128xf32>
    %7 = vector.broadcast %6 : vector<1x128xf32> to vector<8x128xf32>
    %8 = arith.addf %5, %7 : vector<8x128xf32>
    %c0_6 = arith.constant 0 : index
    %c0_7 = arith.constant 0 : index
    %9 = vector.load %arg8[%c0_6, %c0_7] : memref<8x128xf32, #tpu.memory_space<vmem>>, vector<8x128xf32>
    tpu.vector_store %arg8[%c0_6, %c0_7], %8 {strides = array<i32>} : memref<8x128xf32, #tpu.memory_space<vmem>>, vector<8x128xf32>,
    %c0_i32_8 = arith.constant 0 : i32
    %c8_i32 = arith.constant 8 : i32
    %10 = arith.muli %c0_i32_8, %c8_i32 : i32
    %11 = tpu.assume_multiple %10, 8 : i32
    %c0_9 = arith.constant 0 : index
    %c0_10 = arith.constant 0 : index
    %12 = vector.load %arg7[%c0_9, %c0_10] : memref<8x128xf32, #tpu.memory_space<vmem>>, vector<8x128xf32>
    %13 = arith.index_cast %11 : i32 to index
    %c0_11 = arith.constant 0 : index
    %14 = vector.load %arg8[%13, %c0_11] : memref<8x128xf32, #tpu.memory_space<vmem>>, vector<8x128xf32>
    %c0_12 = arith.constant 0 : index
    %c0_13 = arith.constant 0 : index
    %15 = vector.load %arg3[%c0_12, %c0_13] : memref<128x128xf32, #tpu.memory_space<vmem>>, vector<128x128xf32>
    %cst_14 = arith.constant dense<0.000000e+00> : vector<8x128xf32>
    %16 = tpu.matmul %12, %15, %cst_14 {dimension_numbers = #tpu.dot_dimension_numbers<[1], [0], [0], [1], [0, 0, 1, 1], [], []>} : vector<8x128xf32>, vector<128x128xf32>, vector<8x128xf32> -> vector<8x128xf32>
    %17 = arith.addf %14, %16 : vector<8x128xf32>
    %18 = math.tanh %17 : vector<8x128xf32>
    %c0_15 = arith.constant 0 : index
    %c0_16 = arith.constant 0 : index
    %19 = vector.load %arg7[%c0_15, %c0_16] : memref<8x128xf32, #tpu.memory_space<vmem>>, vector<8x128xf32>
    tpu.vector_store %arg7[%c0_15, %c0_16], %18 {strides = array<i32>} : memref<8x128xf32, #tpu.memory_space<vmem>>, vector<8x128xf32>,
    %20 = arith.index_cast %11 : i32 to index
    %c0_17 = arith.constant 0 : index
    %21 = vector.load %arg6[%20, %c0_17] : memref<8x128xf32, #tpu.memory_space<vmem>>, vector<8x128xf32>
    tpu.vector_store %arg6[%20, %c0_17], %18 {strides = array<i32>} : memref<8x128xf32, #tpu.memory_space<vmem>>, vector<8x128xf32>,
    %c1_i32 = arith.constant 1 : i32
    return
  }
  func.func @transform_0(%arg0: i32) -> (i32, i32) {
    %c0_i32 = arith.constant 0 : i32
    %c0_i32_0 = arith.constant 0 : i32
    return %arg0, %c0_i32 : i32, i32
  }
  func.func @transform_1(%arg0: i32) -> (i32, i32) {
    %c0_i32 = arith.constant 0 : i32
    %c0_i32_0 = arith.constant 0 : i32
    %c0_i32_1 = arith.constant 0 : i32
    return %c0_i32, %c0_i32_0 : i32, i32
  }
  func.func @transform_2(%arg0: i32) -> (i32, i32) {
    %c0_i32 = arith.constant 0 : i32
    %c0_i32_0 = arith.constant 0 : i32
    %c0_i32_1 = arith.constant 0 : i32
    return %c0_i32, %c0_i32_0 : i32, i32
  }
  func.func @transform_3(%arg0: i32) -> (i32, i32) {
    %c0_i32 = arith.constant 0 : i32
    %c0_i32_0 = arith.constant 0 : i32
    %c0_i32_1 = arith.constant 0 : i32
    return %c0_i32, %c0_i32_0 : i32, i32
  }
  func.func @transform_4(%arg0: i32) -> (i32, i32) {
    %c0_i32 = arith.constant 0 : i32
    %c0_i32_0 = arith.constant 0 : i32
    %c0_i32_1 = arith.constant 0 : i32
    return %c0_i32, %c0_i32_0 : i32, i32
  }
  func.func @transform_5(%arg0: i32) -> (i32, i32) {
    %c0_i32 = arith.constant 0 : i32
    %c0_i32_0 = arith.constant 0 : i32
    return %arg0, %c0_i32 : i32, i32
  }
}

</mosaic_0001>

<llo_original>
// kernel: rnn_seq_forward.1
$region0: #{rnn_seq_forward.1}
  #allocation0 [shape = 'u32[]', space=smem, size = 0x4, offset = 0x4, fixed_abs, tag = 'smem constant byte address 0x4 - core index']
  #allocation1 [shape = 'u32[144,128]{1,0:T(1,128)}', space=vmem, size = 0x12000, scoped, tag = 'internal scratch']
  #allocation2 [shape = 'f32[8,128]{1,0:T(8,128)}', space=vmem, size = 0x1000, scoped, tag = 'scratch operand']
  #allocation3 [shape = 'f32[8,128]{1,0:T(8,128)}', space=vmem, size = 0x1000, scoped, tag = 'scratch operand']
  %s0 = inlined_call_operand.vmem [shape: f32[8,8], index: 0, kind: input, shape index: {}]
  %s1 = inlined_call_operand.vmem [shape: f32[8,128], index: 1, kind: input, shape index: {}]
  %s2 = inlined_call_operand.hbm [shape: f32[128,128], index: 2, kind: input, shape index: {}]
  %s3 = inlined_call_operand.vmem [shape: f32[1,128], index: 3, kind: input, shape index: {}]
  %s4 = inlined_call_operand.vmem [shape: f32[8,128], index: 4, kind: input, shape index: {}]
  %s5 = inlined_call_operand.vmem [shape: f32[8,128], index: 5, kind: output, shape index: {}]
  %s6 = sld [smem:[#allocation0]]
  $region38: #{rnn_seq_forward.1} parent=0
    _
  %s8 = ssub.s32 1, %s6
  %s9 = scalar_select 0, %s8, %s6
  $region1: #{rnn_seq_forward.1} parent=0
    #allocation4 [shape = 'u8[65536]{0}', space=vmem, size = 0x10000, scoped, tag = 'input window, operand 2, single buffered']
    #allocation5 [shape = 's32[1]{0}', space=sflag, size = 0x4, scoped, tag = 'scoped memory for rnn_seq_forward.1']
    %10 = vsyncpa [#allocation5], 0
    // Predicated region
    $region2: #{rnn_seq_forward.1} parent=1 // pred_check
      _
    $region3: #{rnn_seq_forward.1} parent=1 // pred_check_branch
      %12 = sbr.rel (0) target = $region5
    $region4: #{rnn_seq_forward.1} parent=1 // pred_region
      _
    $region5: #{rnn_seq_forward.1} parent=1 // pred_fallthru
      _
    // Predicated region
    $region6: #{rnn_seq_forward.1} parent=1 // pred_check
      _
    $region7: #{rnn_seq_forward.1} parent=1 // pred_check_branch
      %14 = sbr.rel (0) target = $region9
    $region8: #{rnn_seq_forward.1} parent=1 // pred_region
      _
    $region9: #{rnn_seq_forward.1} parent=1 // pred_fallthru
      _
    // Predicated region
    $region10: #{rnn_seq_forward.1} parent=1 // pred_check
      _
    $region11: #{rnn_seq_forward.1} parent=1 // pred_check_branch
      %16 = sbr.rel (0) target = $region13
    $region12: #{rnn_seq_forward.1} parent=1 // pred_region
      %s18 = ssub.s32 2048, 2048
      %19 = vsyncadd [#allocation5], %s18
      %s20 = sshll.u32 [#allocation4], 4
      %s21 = int_to_ptr.vmem [resolvable:$true] %s20
      %26 = dma.hbm_to_vmem [thread:$0]  %s2, 2048, %s21, [#allocation5], 128, 128, 8
    $region13: #{rnn_seq_forward.1} parent=1 // pred_fallthru
      _
    // Predicated region
    $region14: #{rnn_seq_forward.1} parent=1 // pred_check
      _
    $region15: #{rnn_seq_forward.1} parent=1 // pred_check_branch
      %28 = sbr.rel (0) target = $region17
    $region16: #{rnn_seq_forward.1} parent=1 // pred_region
      _
    $region17: #{rnn_seq_forward.1} parent=1 // pred_fallthru
      _
    // Predicated region
    $region18: #{rnn_seq_forward.1} parent=1 // pred_check
      _
    $region19: #{rnn_seq_forward.1} parent=1 // pred_check_branch
      %30 = sbr.rel (0) target = $region21
    $region20: #{rnn_seq_forward.1} parent=1 // pred_region
      _
    $region21: #{rnn_seq_forward.1} parent=1 // pred_fallthru
      _
    // Predicated region
    $region22: #{rnn_seq_forward.1} parent=1 // pred_check
      _
    $region23: #{rnn_seq_forward.1} parent=1 // pred_check_branch
      %32 = sbr.rel (0) target = $region25
    $region24: #{rnn_seq_forward.1} parent=1 // pred_region
      %33 = dma.done [#allocation5], 2048
    $region25: #{rnn_seq_forward.1} parent=1 // pred_fallthru
      _
    %p34 = scmp.eq.s32.totalorder 0, 0
    // Predicated region
    $region26: #{rnn_seq_forward.1} parent=1 // pred_check
      %p35 = pneg %p34
    $region27: #{rnn_seq_forward.1} parent=1 // pred_check_branch
      %37 = sbr.rel (%p35) target = $region29
    $region28: #{rnn_seq_forward.1} parent=1 // pred_region
      %v38 = vld [vmem:[%s4] sm:$0xff]
      %39 = vst [vmem:[#allocation2] sm:$0xff] %v38
    $region29: #{rnn_seq_forward.1} parent=1 // pred_fallthru
      _
    %v40 = vld [vmem:[%s0] sm:$0xff]
    %v41 = vld [vmem:[%s1] sm:$0xff]
    %v42 = vld [vmem:[%s3] sm:$0x1]
    %v44 = vlaneseq
    %v45 = vshrl.u32 %v44, 7
    %v46 = vsub.s32 0, %v45
    %v47 = vrot.slane %v42, %v46
    %vm49 = vcmask 64512
    %v51 = vsel %vm49, %v40, 0
    %53 = vmatprep.subr.mxu0 0.0
    %54 = vmatpush1.msra.mxu0 %v41
    %55 = vmatprep.subr.mxu0 0.0
    %56 = vmatpush1.msra.mxu0 0.0
    %57 = vmatprep.subr.mxu0 0.0
    %58 = vmatpush1.msra.mxu0 0.0
    %59 = vmatprep.subr.mxu0 0.0
    %60 = vmatpush1.msra.mxu0 0.0
    %61 = vmatprep.subr.mxu0 0.0
    %62 = vmatpush1.msra.mxu0 0.0
    %63 = vmatprep.subr.mxu0 0.0
    %64 = vmatpush1.msra.mxu0 0.0
    %65 = vmatprep.subr.mxu0 0.0
    %66 = vmatpush1.msra.mxu0 0.0
    %67 = vmatprep.subr.mxu0 0.0
    %68 = vmatpush1.msra.mxu0 0.0
    %69 = vmatprep.subr.mxu0 0.0
    %70 = vmatpush1.msra.mxu0 0.0
    %71 = vmatprep.subr.mxu0 0.0
    %72 = vmatpush1.msra.mxu0 0.0
    %73 = vmatprep.subr.mxu0 0.0
    %74 = vmatpush1.msra.mxu0 0.0
    %75 = vmatprep.subr.mxu0 0.0
    %76 = vmatpush1.msra.mxu0 0.0
    %77 = vmatprep.subr.mxu0 0.0
    %78 = vmatpush1.msra.mxu0 0.0
    %79 = vmatprep.subr.mxu0 0.0
    %80 = vmatpush1.msra.mxu0 0.0
    %81 = vmatprep.subr.mxu0 0.0
    %82 = vmatpush1.msra.mxu0 0.0
    %83 = vmatprep.subr.mxu0 0.0
    %84 = vmatpush1.msra.mxu0 0.0
    %85 = vmatprep.subr.mxu0 0.0
    %86 = vmatpush1.msra.mxu0 0.0
    %87 = vmatprep.subr.mxu0 0.0
    %88 = vmatpush1.msra.mxu0 0.0
    %89 = vmatprep.subr.mxu0 0.0
    %90 = vmatpush1.msra.mxu0 0.0
    %91 = vmatprep.subr.mxu0 0.0
    %92 = vmatpush1.msra.mxu0 0.0
    %93 = vmatprep.subr.mxu0 0.0
    %94 = vmatpush1.msra.mxu0 0.0
    %95 = vmatprep.subr.mxu0 0.0
    %96 = vmatpush1.msra.mxu0 0.0
    %97 = vmatprep.subr.mxu0 0.0
    %98 = vmatpush1.msra.mxu0 0.0
    %99 = vmatprep.subr.mxu0 0.0
    %100 = vmatpush1.msra.mxu0 0.0
    %101 = vmatprep.subr.mxu0 0.0
    %102 = vmatpush1.msra.mxu0 0.0
    %103 = vmatprep.subr.mxu0 0.0
    %104 = vmatpush1.msra.mxu0 0.0
    %105 = vmatprep.subr.mxu0 0.0
    %106 = vmatpush1.msra.mxu0 0.0
    %107 = vmatprep.subr.mxu0 0.0
    %108 = vmatpush1.msra.mxu0 0.0
    %109 = vmatprep.subr.mxu0 0.0
    %110 = vmatpush1.msra.mxu0 0.0
    %111 = vmatprep.subr.mxu0 0.0
    %112 = vmatpush1.msra.mxu0 0.0
    %113 = vmatprep.subr.mxu0 0.0
    %114 = vmatpush1.msra.mxu0 0.0
    %115 = vmatprep.subr.mxu0 0.0
    %116 = vmatpush1.msra.mxu0 0.0
    %117 = vmatprep.mubr.f32.mxu0 0.0
    %118 = vmatmul.mubr.f32.gmra.mrb[0].mxu0 %v51
    %v119 = vpop.f32.mrb[0].mxu0
    %v120 = vadd.f32 %v47, %v119
    %v121 = vpop.f32.mrb[0].mxu0
    %122 = vdwg.mxu0
    %123 = vst [vmem:[#allocation3] sm:$0xff] %v120
    %v124 = vld [vmem:[#allocation2] sm:$0xff]
    %v125 = vld [vmem:[#allocation3] sm:$0xff]
    %v126 = vld [vmem:[#allocation4] sm:$0xff]
    %v127 = vld [vmem:[#allocation4 + $0x8] sm:$0xff]
    %v128 = vld [vmem:[#allocation4 + $0x10] sm:$0xff]
    %v129 = vld [vmem:[#allocation4 + $0x18] sm:$0xff]
    %v130 = vld [vmem:[#allocation4 + $0x20] sm:$0xff]
    %v131 = vld [vmem:[#allocation4 + $0x28] sm:$0xff]
    %v132 = vld [vmem:[#allocation4 + $0x30] sm:$0xff]
    %v133 = vld [vmem:[#allocation4 + $0x38] sm:$0xff]
    %v134 = vld [vmem:[#allocation4 + $0x40] sm:$0xff]
    %v135 = vld [vmem:[#allocation4 + $0x48] sm:$0xff]
    %v136 = vld [vmem:[#allocation4 + $0x50] sm:$0xff]
    %v137 = vld [vmem:[#allocation4 + $0x58] sm:$0xff]
    %v138 = vld [vmem:[#allocation4 + $0x60] sm:$0xff]
    %v139 = vld [vmem:[#allocation4 + $0x68] sm:$0xff]
    %v140 = vld [vmem:[#allocation4 + $0x70] sm:$0xff]
    %v141 = vld [vmem:[#allocation4 + $0x78] sm:$0xff]
    %142 = vmatprep.subr.mxu0 0.0
    %143 = vmatpush1.msra.mxu0 %v126
    %144 = vmatprep.subr.mxu0 0.0
    %145 = vmatpush1.msra.mxu0 %v127
    %146 = vmatprep.subr.mxu0 0.0
    %147 = vmatpush1.msra.mxu0 %v128
    %148 = vmatprep.subr.mxu0 0.0
    %149 = vmatpush1.msra.mxu0 %v129
    %150 = vmatprep.subr.mxu0 0.0
    %151 = vmatpush1.msra.mxu0 %v130
    %152 = vmatprep.subr.mxu0 0.0
    %153 = vmatpush1.msra.mxu0 %v131
    %154 = vmatprep.subr.mxu0 0.0
    %155 = vmatpush1.msra.mxu0 %v132
    %156 = vmatprep.subr.mxu0 0.0
    %157 = vmatpush1.msra.mxu0 %v133
    %158 = vmatprep.subr.mxu0 0.0
    %159 = vmatpush1.msra.mxu0 %v134
    %160 = vmatprep.subr.mxu0 0.0
    %161 = vmatpush1.msra.mxu0 %v135
    %162 = vmatprep.subr.mxu0 0.0
    %163 = vmatpush1.msra.mxu0 %v136
    %164 = vmatprep.subr.mxu0 0.0
    %165 = vmatpush1.msra.mxu0 %v137
    %166 = vmatprep.subr.mxu0 0.0
    %167 = vmatpush1.msra.mxu0 %v138
    %168 = vmatprep.subr.mxu0 0.0
    %169 = vmatpush1.msra.mxu0 %v139
    %170 = vmatprep.subr.mxu0 0.0
    %171 = vmatpush1.msra.mxu0 %v140
    %172 = vmatprep.subr.mxu0 0.0
    %173 = vmatpush1.msra.mxu0 %v141
    %174 = vmatprep.subr.mxu0 0.0
    %175 = vmatpush1.msra.mxu0 0.0
    %176 = vmatprep.subr.mxu0 0.0
    %177 = vmatpush1.msra.mxu0 0.0
    %178 = vmatprep.subr.mxu0 0.0
    %179 = vmatpush1.msra.mxu0 0.0
    %180 = vmatprep.subr.mxu0 0.0
    %181 = vmatpush1.msra.mxu0 0.0
    %182 = vmatprep.subr.mxu0 0.0
    %183 = vmatpush1.msra.mxu0 0.0
    %184 = vmatprep.subr.mxu0 0.0
    %185 = vmatpush1.msra.mxu0 0.0
    %186 = vmatprep.subr.mxu0 0.0
    %187 = vmatpush1.msra.mxu0 0.0
    %188 = vmatprep.subr.mxu0 0.0
    %189 = vmatpush1.msra.mxu0 0.0
    %190 = vmatprep.subr.mxu0 0.0
    %191 = vmatpush1.msra.mxu0 0.0
    %192 = vmatprep.subr.mxu0 0.0
    %193 = vmatpush1.msra.mxu0 0.0
    %194 = vmatprep.subr.mxu0 0.0
    %195 = vmatpush1.msra.mxu0 0.0
    %196 = vmatprep.subr.mxu0 0.0
    %197 = vmatpush1.msra.mxu0 0.0
    %198 = vmatprep.subr.mxu0 0.0
    %199 = vmatpush1.msra.mxu0 0.0
    %200 = vmatprep.subr.mxu0 0.0
    %201 = vmatpush1.msra.mxu0 0.0
    %202 = vmatprep.subr.mxu0 0.0
    %203 = vmatpush1.msra.mxu0 0.0
    %204 = vmatprep.subr.mxu0 0.0
    %205 = vmatpush1.msra.mxu0 0.0
    %206 = vmatprep.mubr.f32.mxu0 0.0
    %207 = vmatmul.mubr.f32.gmra.mrb[0].mxu0 %v124
    %v208 = vpop.f32.mrb[0].mxu0
    %v209 = vadd.f32 0.0, %v208
    %v210 = vpop.f32.mrb[0].mxu0
    %211 = vdwg.mxu0
    %v212 = vadd.f32 %v125, %v209
    %v213 = vtanh.pop %v212
    %214 = vst [vmem:[#allocation2] sm:$0xff] %v213
    %215 = vst [vmem:[%s5] sm:$0xff] %v213
    // Predicated region
    $region30: #{rnn_seq_forward.1} parent=1 // pred_check
      _
    $region31: #{rnn_seq_forward.1} parent=1 // pred_check_branch
      %217 = sbr.rel (0) target = $region33
    $region32: #{rnn_seq_forward.1} parent=1 // pred_region
      _
    $region33: #{rnn_seq_forward.1} parent=1 // pred_fallthru
      _
    // Predicated region
    $region34: #{rnn_seq_forward.1} parent=1 // pred_check
      _
    $region35: #{rnn_seq_forward.1} parent=1 // pred_check_branch
      %219 = sbr.rel (0) target = $region37
    $region36: #{rnn_seq_forward.1} parent=1 // pred_region
      _
    $region37: #{rnn_seq_forward.1} parent=1 // pred_fallthru
      _
    %220 = vsyncpa [#allocation5], 1

</llo_original>
